<compile_context>
chip_gen: v5e
topology: v5e:2x2
jax: 0.10.0
libtpu: 0.0.40
codegen_flags: <defaults>
</compile_context>

<pallas_src>
import functools

import jax
import jax.numpy as jnp
from jax.experimental import pallas as pl
from jax.experimental.pallas import tpu as pltpu


def _round_up(x, m):
    return ((x + m - 1) // m) * m


# ----------------------------------------------------------------------------
# Kernel: one (token-tile, ffn-tile) grid step of the fused GLM MLP.
# ----------------------------------------------------------------------------
def _glm_mlp_kernel(x_ref, w1_ref, w2_ref, o_ref, acc_ref, *, tf):
    f = pl.program_id(1)

    @pl.when(f == 0)
    def _init():
        acc_ref[...] = jnp.zeros_like(acc_ref)

    x = x_ref[...]
    # One fused MXU matmul against this FFN block's packed [gate | up] columns
    # (N = 2*tf >= 256 keeps the 256-wide MXU full even when tf == 128), f32 acc.
    gu = jnp.dot(x, w1_ref[...], preferred_element_type=jnp.float32)
    gate = gu[:, :tf]          # tf is a multiple of 128 -> lane-tile-aligned slice
    up = gu[:, tf:]
    # SiluAndMul in f32 on the VPU/EUP (slots otherwise idle next to the MXU).
    act = gate * jax.nn.sigmoid(gate) * up
    # Partial 4h->h matmul for this FFN block, accumulated in f32.
    acc_ref[...] += jnp.dot(act.astype(w2_ref.dtype), w2_ref[...],
                            preferred_element_type=jnp.float32)

    @pl.when(f == pl.num_programs(1) - 1)
    def _finalize():
        o_ref[...] = acc_ref[...].astype(o_ref.dtype)


# ----------------------------------------------------------------------------
# One-time weight prep (do this at weight-load time, NOT per forward call).
# ----------------------------------------------------------------------------
def prepare_glm_mlp_weights(w1_t, w2_t, tf=None):
    """Pad the FFN dim to a multiple of tf and repack w1 so each FFN block's
    gate and up columns are adjacent ([H, 2*tf] fused blocks).

    w1_t: [H, 2*F]  (dense_h_to_4h weight, pre-transposed vs nn.Linear)
    w2_t: [F, H]    (dense_4h_to_h weight, pre-transposed vs nn.Linear)
    Returns (w1_packed [H, 2*F_pad], w2_padded [F_pad, H], tf).
    """
    H, two_f = w1_t.shape
    F = two_f // 2
    assert w2_t.shape == (F, H)

    if tf is None:
        tf = 512 if F >= 512 else max(128, _round_up(F, 128))
    tf = max(128, _round_up(tf, 128))
    F_pad = _round_up(F, tf)

    w_gate = w1_t[:, :F]
    w_up = w1_t[:, F:]
    if F_pad != F:
        col_pad = ((0, 0), (0, F_pad - F))
        w_gate = jnp.pad(w_gate, col_pad)        # zero cols -> gate = 0
        w_up = jnp.pad(w_up, col_pad)            # zero cols -> up   = 0
        w2_t = jnp.pad(w2_t, ((0, F_pad - F), (0, 0)))  # zero rows

    nf = F_pad // tf
    # Repack: block f holds [gate_f | up_f] -> single N = 2*tf GEMM per step.
    w1_packed = jnp.concatenate(
        [w_gate.reshape(H, nf, tf), w_up.reshape(H, nf, tf)], axis=2
    ).reshape(H, 2 * F_pad)
    return w1_packed, w2_t, tf


# ----------------------------------------------------------------------------
# Fused MLP on prepared (packed/padded) weights.
# ----------------------------------------------------------------------------
def glm_mlp(hidden_states, w1_packed, w2_padded, tf, *, tm=None):
    """hidden_states: [T, H]; w1_packed: [H, 2*F_pad]; w2_padded: [F_pad, H]."""
    T, H = hidden_states.shape
    two_fp = w1_packed.shape[1]
    F_pad = two_fp // 2
    assert w1_packed.shape == (H, two_fp)
    assert w2_padded.shape == (F_pad, H)
    assert tf % 128 == 0 and F_pad % tf == 0
    nf = F_pad // tf

    x_bytes = jnp.dtype(hidden_states.dtype).itemsize
    w_bytes = jnp.dtype(w1_packed.dtype).itemsize
    out_bytes = x_bytes

    # ---- VMEM budget: real capacity when queryable, else safe v7x floor ----
    try:
        phys_vmem = int(pltpu.get_tpu_info().vmem_capacity_bytes)
    except Exception:
        phys_vmem = 64 << 20
    cap = int(phys_vmem * 0.85)

    def working_set(tm_, wbuf):
        return (2 * tm_ * H * x_bytes              # x tile (double-buffered)
                + wbuf * H * 2 * tf * w_bytes      # packed [gate|up] weight tile
                + wbuf * tf * H * w_bytes          # w2 weight tile
                + 2 * tm_ * H * out_bytes          # output tile
                + tm_ * H * 4)                     # f32 accumulator

    # ---- token tile: generation-aware, then shrink to fit VMEM --------------
    if tm is None:
        tm = _round_up(T, 8) if T <= 512 else 512
    tm = max(8, _round_up(tm, 8))
    while tm > 8 and working_set(tm, 2) > cap:
        tm = max(8, _round_up(tm // 2, 8))

    # Decode-shaped calls: per-step MXU time << weight-DMA time, so run the
    # weight pipeline 3-deep to hide DMA issue latency.
    deep_weights = (tm <= 64) and (nf >= 3)
    wbuf = 3 if deep_weights else 2
    ws = working_set(tm, wbuf)
    vmem_limit = int(min(cap, max(int(ws * 1.25), 32 << 20)))

    T_pad = _round_up(T, tm)
    x = hidden_states
    if T_pad != T:
        x = jnp.pad(x, ((0, T_pad - T), (0, 0)))   # zero rows -> zero outputs

    n_token_tiles = T_pad // tm
    grid = (n_token_tiles, nf)

    def _w_spec(block_shape, index_map):
        if deep_weights:
            try:
                return pl.BlockSpec(block_shape, index_map,
                                    pipeline_mode=pl.Buffered(3))
            except Exception:   # older jax without pipeline_mode/Buffered
                pass
        return pl.BlockSpec(block_shape, index_map)

    # Weights are re-streamed once per token tile; x read once; out written once.
    cost = pl.CostEstimate(
        flops=2 * T_pad * H * (2 * F_pad) + 2 * T_pad * F_pad * H,
        transcendentals=T_pad * F_pad,
        bytes_accessed=int(
            T_pad * H * x_bytes
            + n_token_tiles * (H * 2 * F_pad + F_pad * H) * w_bytes
            + T_pad * H * out_bytes),
    )

    out = pl.pallas_call(
        functools.partial(_glm_mlp_kernel, tf=tf),
        out_shape=jax.ShapeDtypeStruct((T_pad, H), hidden_states.dtype),
        grid=grid,
        in_specs=[
            pl.BlockSpec((tm, H), lambda i, f: (i, 0)),     # x token tile
            _w_spec((H, 2 * tf), lambda i, f: (0, f)),      # packed [gate|up] cols
            _w_spec((tf, H), lambda i, f: (f, 0)),          # w2 rows
        ],
        out_specs=pl.BlockSpec((tm, H), lambda i, f: (i, 0)),
        scratch_shapes=[pltpu.VMEM((tm, H), jnp.float32)],
        compiler_params=pltpu.CompilerParams(
            dimension_semantics=("parallel", "arbitrary"),
            vmem_limit_bytes=vmem_limit,
        ),
        cost_estimate=cost,
    )(x, w1_packed, w2_padded)

    if T_pad != T:
        out = out[:T]
    return out


def glm_mlp_forward(hidden_states, w1_t, w2_t, *, tf=None, tm=None):
    """Convenience wrapper matching GLMMLP.forward.  In a serving stack,
    prepare_glm_mlp_weights() should be hoisted to weight-load time."""
    w1_packed, w2_padded, tf = prepare_glm_mlp_weights(w1_t, w2_t, tf)
    return glm_mlp(hidden_states, w1_packed, w2_padded, tf, tm=tm)


def _reference(hidden_states, w1_t, w2_t):
    F = w2_t.shape[0]
    h = hidden_states @ w1_t
    gate, up = h[:, :F], h[:, F:]
    return (jax.nn.silu(gate) * up) @ w2_t


if __name__ == "__main__":
    key = jax.random.PRNGKey(0)
    k1, k2, k3, k4, k5, k6, k7, k8, k9 = jax.random.split(key, 9)

    # Test 1: small shapes consistent with the module (seq=8, hidden=32, ffn=64).
    # Exercises FFN padding (F=64 -> F_pad=128).
    T, H, F = 8, 32, 64
    x = jax.random.normal(k1, (T, H), dtype=jnp.float32)
    w1_t = jax.random.normal(k2, (H, 2 * F), dtype=jnp.float32) * 0.05
    w2_t = jax.random.normal(k3, (F, H), dtype=jnp.float32) * 0.05

    out = glm_mlp_forward(x, w1_t, w2_t)
    jax.block_until_ready(out)
    ref = _reference(x, w1_t, w2_t)
    assert out.shape == (T, H)
    assert jnp.allclose(out, ref, atol=1e-4, rtol=1e-4), "small-shape mismatch"

    # Test 2: tiled token axis + FFN-reduction accumulator (grid = (2, 2)),
    # including token padding (T=13 -> padded to 16).
    T2, H2, F2 = 13, 128, 256
    x2 = jax.random.normal(k4, (T2, H2), dtype=jnp.float32)
    w1b = jax.random.normal(k5, (H2, 2 * F2), dtype=jnp.float32) * 0.03
    w2b = jax.random.normal(k6, (F2, H2), dtype=jnp.float32) * 0.03

    out2 = glm_mlp_forward(x2, w1b, w2b, tf=128, tm=8)
    jax.block_until_ready(out2)
    ref2 = _reference(x2, w1b, w2b)
    assert out2.shape == (T2, H2)
    assert jnp.allclose(out2, ref2, atol=5e-3, rtol=5e-2), "tiled-grid mismatch"

    # Test 3: decode-shaped call with several FFN steps (nf=4) to exercise the
    # 3-deep weight pipeline (pl.Buffered) path.
    T3, H3, F3 = 8, 128, 512
    x3 = jax.random.normal(k7, (T3, H3), dtype=jnp.float32)
    w1c = jax.random.normal(k8, (H3, 2 * F3), dtype=jnp.float32) * 0.03
    w2c = jax.random.normal(k9, (F3, H3), dtype=jnp.float32) * 0.03

    out3 = glm_mlp_forward(x3, w1c, w2c, tf=128)
    jax.block_until_ready(out3)
    ref3 = _reference(x3, w1c, w2c)
    assert out3.shape == (T3, H3)
    assert jnp.allclose(out3, ref3, atol=5e-3, rtol=5e-2), "deep-pipeline mismatch"

    print("KERNEL_OK")
</pallas_src>

<mosaic_0001>
module attributes {stable_mosaic.version = 11 : i64} {
  func.func @_glm_mlp_kernel(%arg0: i32, %arg1: i32, %arg2: memref<8x32xf32, #tpu.memory_space<vmem>>, %arg3: memref<32x256xf32, #tpu.memory_space<vmem>>, %arg4: memref<128x32xf32, #tpu.memory_space<vmem>>, %arg5: memref<8x32xf32, #tpu.memory_space<vmem>>, %arg6: memref<8x32xf32, #tpu.memory_space<vmem>>) attributes {dimension_semantics = [#tpu.dimension_semantics<parallel>, #tpu.dimension_semantics<arbitrary>], iteration_bounds = array<i64: 1, 1>, scalar_prefetch = 0 : i64, scratch_operands = 1 : i64, tpu.core_type = #tpu.core_type<tc>, window_params = [{transform_indices = @transform_0, window_bounds = array<i64: 8, 32>}, {transform_indices = @transform_1, window_bounds = array<i64: 32, 256>}, {transform_indices = @transform_2, window_bounds = array<i64: 128, 32>}, {transform_indices = @transform_3, window_bounds = array<i64: 8, 32>}]} {
    %c0_i32 = arith.constant 0 : i32
    %0 = arith.cmpi eq, %arg1, %c0_i32 : i32
    %1 = arith.extui %0 : i1 to i32
    %c0_i32_0 = arith.constant 0 : i32
    %2 = arith.cmpi ne, %1, %c0_i32_0 : i32
    scf.if %2 {
      %cst_14 = arith.constant 0.000000e+00 : f32
      %23 = vector.broadcast %cst_14 : f32 to vector<8x32xf32>
      %c0_15 = arith.constant 0 : index
      %c0_16 = arith.constant 0 : index
      %24 = vector.load %arg6[%c0_15, %c0_16] : memref<8x32xf32, #tpu.memory_space<vmem>>, vector<8x32xf32>
      tpu.vector_store %arg6[%c0_15, %c0_16], %23 {strides = array<i32>} : memref<8x32xf32, #tpu.memory_space<vmem>>, vector<8x32xf32>,
    } else {
    }
    %c0 = arith.constant 0 : index
    %c0_1 = arith.constant 0 : index
    %3 = vector.load %arg2[%c0, %c0_1] : memref<8x32xf32, #tpu.memory_space<vmem>>, vector<8x32xf32>
    %c0_2 = arith.constant 0 : index
    %c0_3 = arith.constant 0 : index
    %4 = vector.load %arg3[%c0_2, %c0_3] : memref<32x256xf32, #tpu.memory_space<vmem>>, vector<32x256xf32>
    %cst = arith.constant dense<0.000000e+00> : vector<8x256xf32>
    %5 = tpu.matmul %3, %4, %cst {dimension_numbers = #tpu.dot_dimension_numbers<[1], [0], [0], [1], [0, 0, 1, 1], [], []>} : vector<8x32xf32>, vector<32x256xf32>, vector<8x256xf32> -> vector<8x256xf32>
    %6 = vector.extract_strided_slice %5 {offsets = [0, 0], sizes = [8, 128], strides = [1, 1]} : vector<8x256xf32> to vector<8x128xf32>
    %7 = vector.extract_strided_slice %5 {offsets = [0, 128], sizes = [8, 128], strides = [1, 1]} : vector<8x256xf32> to vector<8x128xf32>
    %8 = arith.negf %6 : vector<8x128xf32>
    %9 = math.exp %8 : vector<8x128xf32>
    %cst_4 = arith.constant 1.000000e+00 : f32
    %10 = vector.broadcast %cst_4 : f32 to vector<8x128xf32>
    %11 = arith.addf %10, %9 : vector<8x128xf32>
    %12 = arith.divf %10, %11 : vector<8x128xf32>
    %13 = arith.mulf %6, %12 : vector<8x128xf32>
    %14 = arith.mulf %13, %7 : vector<8x128xf32>
    %c0_5 = arith.constant 0 : index
    %c0_6 = arith.constant 0 : index
    %15 = vector.load %arg6[%c0_5, %c0_6] : memref<8x32xf32, #tpu.memory_space<vmem>>, vector<8x32xf32>
    %c0_7 = arith.constant 0 : index
    %c0_8 = arith.constant 0 : index
    %16 = vector.load %arg4[%c0_7, %c0_8] : memref<128x32xf32, #tpu.memory_space<vmem>>, vector<128x32xf32>
    %cst_9 = arith.constant dense<0.000000e+00> : vector<8x32xf32>
    %17 = tpu.matmul %14, %16, %cst_9 {dimension_numbers = #tpu.dot_dimension_numbers<[1], [0], [0], [1], [0, 0, 1, 1], [], []>} : vector<8x128xf32>, vector<128x32xf32>, vector<8x32xf32> -> vector<8x32xf32>
    %18 = arith.addf %15, %17 : vector<8x32xf32>
    %c0_10 = arith.constant 0 : index
    %c0_11 = arith.constant 0 : index
    %19 = vector.load %arg6[%c0_10, %c0_11] : memref<8x32xf32, #tpu.memory_space<vmem>>, vector<8x32xf32>
    tpu.vector_store %arg6[%c0_10, %c0_11], %18 {strides = array<i32>} : memref<8x32xf32, #tpu.memory_space<vmem>>, vector<8x32xf32>,
    %c0_i32_12 = arith.constant 0 : i32
    %20 = arith.cmpi eq, %arg1, %c0_i32_12 : i32
    %21 = arith.extui %20 : i1 to i32
    %c0_i32_13 = arith.constant 0 : i32
    %22 = arith.cmpi ne, %21, %c0_i32_13 : i32
    scf.if %22 {
      %c0_14 = arith.constant 0 : index
      %c0_15 = arith.constant 0 : index
      %23 = vector.load %arg6[%c0_14, %c0_15] : memref<8x32xf32, #tpu.memory_space<vmem>>, vector<8x32xf32>
      %c0_16 = arith.constant 0 : index
      %c0_17 = arith.constant 0 : index
      %24 = vector.load %arg5[%c0_16, %c0_17] : memref<8x32xf32, #tpu.memory_space<vmem>>, vector<8x32xf32>
      tpu.vector_store %arg5[%c0_16, %c0_17], %23 {strides = array<i32>} : memref<8x32xf32, #tpu.memory_space<vmem>>, vector<8x32xf32>,
    } else {
    }
    return
  }
  func.func @transform_0(%arg0: i32, %arg1: i32) -> (i32, i32) {
    %c0_i32 = arith.constant 0 : i32
    %c0_i32_0 = arith.constant 0 : i32
    return %arg0, %c0_i32 : i32, i32
  }
  func.func @transform_1(%arg0: i32, %arg1: i32) -> (i32, i32) {
    %c0_i32 = arith.constant 0 : i32
    %c0_i32_0 = arith.constant 0 : i32
    return %c0_i32, %arg1 : i32, i32
  }
  func.func @transform_2(%arg0: i32, %arg1: i32) -> (i32, i32) {
    %c0_i32 = arith.constant 0 : i32
    %c0_i32_0 = arith.constant 0 : i32
    return %arg1, %c0_i32 : i32, i32
  }
  func.func @transform_3(%arg0: i32, %arg1: i32) -> (i32, i32) {
    %c0_i32 = arith.constant 0 : i32
    %c0_i32_0 = arith.constant 0 : i32
    return %arg0, %c0_i32 : i32, i32
  }
}

</mosaic_0001>

<llo_original>
// kernel: tpu_custom_call.1
$region0: #{tpu_custom_call.1}
  #allocation0 [shape = 'u32[]', space=smem, size = 0x4, offset = 0x4, fixed_abs, tag = 'smem constant byte address 0x4 - core index']
  #allocation1 [shape = 'u32[72,128]{1,0:T(1,128)}', space=vmem, size = 0x9000, scoped, tag = 'internal scratch']
  #allocation2 [shape = 'f32[8,32]{1,0:T(8,128)}', space=vmem, size = 0x1000, scoped, tag = 'scratch operand']
  %s0 = inlined_call_operand.vmem [shape: f32[8,32], index: 0, kind: input, shape index: {}]
  %s1 = inlined_call_operand.vmem [shape: f32[32,256], index: 1, kind: input, shape index: {}]
  %s2 = inlined_call_operand.vmem [shape: f32[128,32], index: 2, kind: input, shape index: {}]
  %s3 = inlined_call_operand.hbm [shape: f32[8,32], index: 3, kind: output, shape index: {}]
  %s4 = sld [smem:[#allocation0]]
  $region30: #{tpu_custom_call.1} parent=0
    _
  %s6 = ssub.s32 1, %s4
  %s7 = scalar_select 0, %s6, %s4
  $region1: #{tpu_custom_call.1} parent=0
    #allocation3 [shape = 'u8[4096]{0}', space=vmem, size = 0x1000, scoped, tag = 'output window, operand 0, single buffered']
    #allocation4 [shape = 's32[1]{0}', space=sflag, size = 0x4, scoped, tag = 'scoped memory for tpu_custom_call.1']
    %8 = vsyncpa [#allocation4], 0
    // Predicated region
    $region2: #{tpu_custom_call.1} parent=1 // pred_check
      _
    $region3: #{tpu_custom_call.1} parent=1 // pred_check_branch
      %10 = sbr.rel (0) target = $region5
    $region4: #{tpu_custom_call.1} parent=1 // pred_region
      _
    $region5: #{tpu_custom_call.1} parent=1 // pred_fallthru
      _
    // Predicated region
    $region6: #{tpu_custom_call.1} parent=1 // pred_check
      _
    $region7: #{tpu_custom_call.1} parent=1 // pred_check_branch
      %12 = sbr.rel (0) target = $region9
    $region8: #{tpu_custom_call.1} parent=1 // pred_region
      _
    $region9: #{tpu_custom_call.1} parent=1 // pred_fallthru
      _
    // Predicated region
    $region10: #{tpu_custom_call.1} parent=1 // pred_check
      _
    $region11: #{tpu_custom_call.1} parent=1 // pred_check_branch
      %14 = sbr.rel (0) target = $region13
    $region12: #{tpu_custom_call.1} parent=1 // pred_region
      _
    $region13: #{tpu_custom_call.1} parent=1 // pred_fallthru
      _
    %p15 = scmp.eq.s32.totalorder 0, 0
    // Predicated region
    $region14: #{tpu_custom_call.1} parent=1 // pred_check
      %p16 = pneg %p15
    $region15: #{tpu_custom_call.1} parent=1 // pred_check_branch
      %18 = sbr.rel (%p16) target = $region17
    $region16: #{tpu_custom_call.1} parent=1 // pred_region
      %vm19 = vcmask 261120
      %20 = vst.msk [vmem:[#allocation2] sm:$0xff] %vm19, 0.0
    $region17: #{tpu_custom_call.1} parent=1 // pred_fallthru
      _
    %v21 = vld [vmem:[%s0] sm:$0xff]
    %v22 = vld [vmem:[%s1] sm:$0xff]
    %v23 = vld [vmem:[%s1 + $0x8] sm:$0xff]
    %v24 = vld [vmem:[%s1 + $0x10] sm:$0xff]
    %v25 = vld [vmem:[%s1 + $0x18] sm:$0xff]
    %v26 = vld [vmem:[%s1 + $0x20] sm:$0xff]
    %v27 = vld [vmem:[%s1 + $0x28] sm:$0xff]
    %v28 = vld [vmem:[%s1 + $0x30] sm:$0xff]
    %v29 = vld [vmem:[%s1 + $0x38] sm:$0xff]
    %vm30 = vcmask 261120
    %v32 = vsel %vm30, %v21, 0
    %34 = vmatpush.msra.mxu0 0.0
    %35 = vmatpush.msra.mxu0 0.0
    %36 = vmatpush.msra.mxu0 0.0
    %37 = vmatpush.msra.mxu0 0.0
    %38 = vmatpush.msra.mxu0 0.0
    %39 = vmatpush.msra.mxu0 0.0
    %40 = vmatpush.msra.mxu0 0.0
    %41 = vmatpush.msra.mxu0 0.0
    %42 = vmatpush.msra.mxu0 0.0
    %43 = vmatpush.msra.mxu0 0.0
    %44 = vmatpush.msra.mxu0 0.0
    %45 = vmatpush.msra.mxu0 0.0
    %46 = vmatpush.msra.mxu0 %v28
    %47 = vmatpush.msra.mxu0 %v26
    %48 = vmatpush.msra.mxu0 %v24
    %49 = vmatpush.msra.mxu0 %v22
    %50 = vmatmul.f32.gmra.mxu0 %v32
    %v51 = vpop.f32.mrf.mxu0
    %v52 = vadd.f32 0.0, %v51
    %53 = vdwg.mxu0
    %54 = vmatpush.msra.mxu0 0.0
    %55 = vmatpush.msra.mxu0 0.0
    %56 = vmatpush.msra.mxu0 0.0
    %57 = vmatpush.msra.mxu0 0.0
    %58 = vmatpush.msra.mxu0 0.0
    %59 = vmatpush.msra.mxu0 0.0
    %60 = vmatpush.msra.mxu0 0.0
    %61 = vmatpush.msra.mxu0 0.0
    %62 = vmatpush.msra.mxu0 0.0
    %63 = vmatpush.msra.mxu0 0.0
    %64 = vmatpush.msra.mxu0 0.0
    %65 = vmatpush.msra.mxu0 0.0
    %66 = vmatpush.msra.mxu0 %v29
    %67 = vmatpush.msra.mxu0 %v27
    %68 = vmatpush.msra.mxu0 %v25
    %69 = vmatpush.msra.mxu0 %v23
    %70 = vmatmul.f32.gmra.mxu0 %v32
    %v71 = vpop.f32.mrf.mxu0
    %v72 = vadd.f32 0.0, %v71
    %73 = vdwg.mxu0
    %v74 = vxor.u32 %v52, 2147483648
    %v75 = vmul.f32 %v74, 1.442695
    %v76 = vpow.pop %v75
    %v77 = vadd.f32 %v76, 1.0
    %v78 = vrcp.pop %v77
    %v79 = vmul.f32 %v77, %v78
    %v80 = vsub.f32 1.0, %v79
    %v81 = vmul.f32 %v78, %v80
    %v82 = vadd.f32 %v78, %v81
    %vm83 = vweird.f32 %v77
    %vm84 = vweird.f32 %v78
    %vm85 = vmor %vm83, %vm84
    %v86 = vsel %vm85, %v78, %v82
    %v87 = vand.u32 2147483647, %v77
    %vm88 = vcmp.eq.f32.partialorder %v87, 8.507059e+37
    %v89 = vand.u32 %v77, 2147483648
    %v90 = vor.u32 1.1754944e-38, %v89
    %v91 = vsel %vm88, %v90, %v86
    %v92 = vmul.f32 1.0, %v91
    %v93 = vmul.f32 %v52, %v92
    %v94 = vmul.f32 %v93, %v72
    %v95 = vld [vmem:[#allocation2] sm:$0xff]
    %v96 = vld [vmem:[%s2] sm:$0xff]
    %v97 = vld [vmem:[%s2 + $0x8] sm:$0xff]
    %v98 = vld [vmem:[%s2 + $0x10] sm:$0xff]
    %v99 = vld [vmem:[%s2 + $0x18] sm:$0xff]
    %v100 = vld [vmem:[%s2 + $0x20] sm:$0xff]
    %v101 = vld [vmem:[%s2 + $0x28] sm:$0xff]
    %v102 = vld [vmem:[%s2 + $0x30] sm:$0xff]
    %v103 = vld [vmem:[%s2 + $0x38] sm:$0xff]
    %v104 = vld [vmem:[%s2 + $0x40] sm:$0xff]
    %v105 = vld [vmem:[%s2 + $0x48] sm:$0xff]
    %v106 = vld [vmem:[%s2 + $0x50] sm:$0xff]
    %v107 = vld [vmem:[%s2 + $0x58] sm:$0xff]
    %v108 = vld [vmem:[%s2 + $0x60] sm:$0xff]
    %v109 = vld [vmem:[%s2 + $0x68] sm:$0xff]
    %v110 = vld [vmem:[%s2 + $0x70] sm:$0xff]
    %v111 = vld [vmem:[%s2 + $0x78] sm:$0xff]
    %112 = vmatpush.msra.mxu0 %v111
    %113 = vmatpush.msra.mxu0 %v110
    %114 = vmatpush.msra.mxu0 %v109
    %115 = vmatpush.msra.mxu0 %v108
    %116 = vmatpush.msra.mxu0 %v107
    %117 = vmatpush.msra.mxu0 %v106
    %118 = vmatpush.msra.mxu0 %v105
    %119 = vmatpush.msra.mxu0 %v104
    %120 = vmatpush.msra.mxu0 %v103
    %121 = vmatpush.msra.mxu0 %v102
    %122 = vmatpush.msra.mxu0 %v101
    %123 = vmatpush.msra.mxu0 %v100
    %124 = vmatpush.msra.mxu0 %v99
    %125 = vmatpush.msra.mxu0 %v98
    %126 = vmatpush.msra.mxu0 %v97
    %127 = vmatpush.msra.mxu0 %v96
    %128 = vmatmul.f32.gmra.mxu0 %v94
    %v129 = vpop.f32.mrf.mxu0
    %v130 = vadd.f32 0.0, %v129
    %131 = vdwg.mxu0
    %v132 = vadd.f32 %v95, %v130
    %133 = vst.msk [vmem:[#allocation2] sm:$0xff] %vm30, %v132
    // Predicated region
    $region18: #{tpu_custom_call.1} parent=1 // pred_check
      %p134 = pneg %p15
    $region19: #{tpu_custom_call.1} parent=1 // pred_check_branch
      %136 = sbr.rel (%p134) target = $region21
    $region20: #{tpu_custom_call.1} parent=1 // pred_region
      %v137 = vld [vmem:[#allocation2] sm:$0xff]
      %138 = vst.msk [vmem:[#allocation3] sm:$0xff] %vm30, %v137
    $region21: #{tpu_custom_call.1} parent=1 // pred_fallthru
      _
    // Predicated region
    $region22: #{tpu_custom_call.1} parent=1 // pred_check
      _
    $region23: #{tpu_custom_call.1} parent=1 // pred_check_branch
      %140 = sbr.rel (0) target = $region25
    $region24: #{tpu_custom_call.1} parent=1 // pred_region
      %142 = vsyncadd [#allocation4], 0
      %s144 = sshll.u32 [#allocation3], 4
      %s145 = int_to_ptr.vmem [resolvable:$true] %s144
      %s146 = sshll.u32 %s3, 4
      %s147 = int_to_ptr.hbm [resolvable:$true] %s146
      %149 = dma.vmem_to_hbm [thread:$0]  %s145, 128, %s147, [#allocation4]
    $region25: #{tpu_custom_call.1} parent=1 // pred_fallthru
      _
    // Predicated region
    $region26: #{tpu_custom_call.1} parent=1 // pred_check
      _
    $region27: #{tpu_custom_call.1} parent=1 // pred_check_branch
      %151 = sbr.rel (0) target = $region29
    $region28: #{tpu_custom_call.1} parent=1 // pred_region
      %153 = dma.done [#allocation4], 128
    $region29: #{tpu_custom_call.1} parent=1 // pred_fallthru
      _
    %154 = vsyncpa [#allocation4], 1

</llo_original>
